<compile_context>
chip_gen: v6e
topology: v6e:2x2x1
jax: 0.10.0
libtpu: 0.0.40
codegen_flags: <defaults>
</compile_context>

<pallas_src>
import jax
import jax.numpy as jnp
from jax import lax
from jax.experimental import pallas as pl
from jax.experimental.pallas import tpu as pltpu


def _round_up(x, m):
    return -(-x // m) * m


# ----------------------------- Pallas kernel -------------------------------

def diffusion_kernel(negbt_ref, approx_ref, L_ref, Q_ref, X_ref, out_ref):
    # negbt_ref:  VMEM (T, 1)   -beta * t per requested time (f32)
    # approx_ref: VMEM (T, 1)   closed-form source scalar per time (f32)
    # L_ref:      VMEM (1, tc)  eigenvalue strip (f32)
    # Q_ref:      VMEM (N, tc)  eigenvector column strip (bf16 or f32)
    # X_ref:      VMEM (2, N)   rows = [x0, a] (resident, same dtype as Q)
    # out_ref:    VMEM (T, N)   f32 per-part accumulator (lane-dense)
    c = pl.program_id(1)

    @pl.when(c == 0)
    def _init():
        out_ref[...] = jnp.zeros_like(out_ref)

    # Heat-kernel weights for every requested time (EUP, kept f32 for v5e).
    w = jnp.exp(negbt_ref[...] * L_ref[...])                       # (T, tc)

    # Spectral coefficients of both RHS rows: X(2,N) @ Q_strip(N,tc)  (MXU).
    coeffs = lax.dot_general(
        X_ref[...], Q_ref[...],
        dimension_numbers=(((1,), (0,)), ((), ())),
        preferred_element_type=jnp.float32)                        # (2, tc)

    # Per-time combined spectral vector: w_t * (c_x0 + approx_t * c_a).
    combined = coeffs[0:1, :] + approx_ref[...] * coeffs[1:2, :]   # (T, tc)
    weighted = (w * combined).astype(Q_ref.dtype)                  # match Q for MXU

    # Partial reconstruction: weighted @ Q_strip^T (MXU transposed-RHS path).
    out_ref[...] += lax.dot_general(
        weighted, Q_ref[...],
        dimension_numbers=(((1,), (1,)), ((), ())),
        preferred_element_type=jnp.float32)                        # (T, N)


# ----------------------------- wrapper --------------------------------------

def network_diffusion_exp_source_forward(beta, xi, time, L, Q, x_0, a, *,
                                          stream_dtype=jnp.bfloat16,
                                          col_tile=None):
    """Pallas forward: Q @ diag(exp(-beta*t*L)) @ Q^T @ (x0 + approx_t*a).

    `time` may be a scalar (returns (N, 1)) or a 1-D array of T times
    (returns (T, N, 1)); the Q stream from HBM is amortized over all times.
    """
    f32 = jnp.float32
    N = Q.shape[0]

    time_arr = jnp.asarray(time, f32)
    scalar_time = time_arr.ndim == 0
    times = time_arr.reshape(-1)                                   # (T,)
    T = times.shape[0]

    beta_s = jnp.asarray(beta, f32).reshape(())
    xi_s = jnp.asarray(xi, f32).reshape(())

    L = jnp.asarray(L, f32)
    Qs = jnp.asarray(Q, f32).astype(stream_dtype)                  # bf16 stream
    x0_flat = jnp.asarray(x_0, f32).reshape(-1)
    a_flat = jnp.asarray(a, f32).reshape(-1)
    X = jnp.stack([x0_flat, a_flat], axis=0).astype(stream_dtype)  # (2, N)

    # Closed-form scalar source factor per time (scalar math, wrapper-side).
    top = L[-1]
    bt = beta_s * top
    approx = (1.0 / (bt + xi_s)) * (jnp.exp(times * (bt + xi_s)) - 1.0) \
        - (1.0 / bt) * (jnp.exp(times * bt) - 1.0)                 # (T,)
    negbt = (-beta_s * times).reshape(T, 1).astype(f32)
    approx = approx.reshape(T, 1).astype(f32)

    # ---- per-generation VMEM plan -------------------------------------------
    itemsize = jnp.dtype(stream_dtype).itemsize
    try:
        info = pltpu.get_tpu_info()
        vmem_cap = int(getattr(info, "vmem_capacity_bytes", 64 * 1024 * 1024))
    except Exception:
        vmem_cap = 64 * 1024 * 1024            # conservative (v7x per-core)
    # Single-buffer Q-strip budget; the pipeline double-buffers it.
    strip_budget = min(vmem_cap // 4, 24 * 1024 * 1024)
    vmem_limit = min((vmem_cap * 3) // 4, 96 * 1024 * 1024)

    if col_tile is None:
        col_tile = (strip_budget // (itemsize * N)) // 128 * 128
        col_tile = int(max(128, col_tile))
        # Small-N single-step path: never over-pad past N itself.
        col_tile = min(col_tile, _round_up(N, 128))
        # TODO(synk): for N >= ~24-32K even a 128-column strip exceeds the v7x
        # budget; a row-tiled reconstruction (extra grid axis over Q rows)
        # would be needed there.
    col_tile = int(col_tile)

    n_strips = pl.cdiv(N, col_tile)
    num_parts = 2 if n_strips >= 2 else 1      # megacore split ("parallel") on v7x
    n_tiles = -(-n_strips // num_parts)        # column strips per part
    Np = num_parts * n_tiles * col_tile

    # Zero-pad the eigen-index axis only: padded columns have zero eigenvectors,
    # so they contribute exactly zero regardless of their (finite) weight.
    L2d = L.reshape(1, N)
    if Np != N:
        Qp = jnp.pad(Qs, ((0, 0), (0, Np - N)))
        Lp = jnp.pad(L2d, ((0, 0), (0, Np - N)))
    else:
        Qp, Lp = Qs, L2d

    flops = 2 * N * Np * (2 + T)
    bytes_accessed = itemsize * (N * Np + 2 * N) + 4 * (Np + num_parts * T * N + 4 * T)

    out_parts = pl.pallas_call(
        diffusion_kernel,
        out_shape=jax.ShapeDtypeStruct((num_parts, T, N), f32),
        grid_spec=pltpu.PrefetchScalarGridSpec(
            num_scalar_prefetch=0,
            grid=(num_parts, n_tiles),
            in_specs=[
                pl.BlockSpec((T, 1), lambda p, c: (0, 0)),                 # -beta*t
                pl.BlockSpec((T, 1), lambda p, c: (0, 0)),                 # approx_t
                pl.BlockSpec((1, col_tile), lambda p, c: (0, p * n_tiles + c)),
                pl.BlockSpec((N, col_tile), lambda p, c: (0, p * n_tiles + c)),
                pl.BlockSpec((2, N), lambda p, c: (0, 0)),                 # X resident
            ],
            out_specs=pl.BlockSpec((None, T, N), lambda p, c: (p, 0, 0)),  # lane-dense
        ),
        compiler_params=pltpu.CompilerParams(
            dimension_semantics=("parallel", "arbitrary"),
            vmem_limit_bytes=vmem_limit,
        ),
        cost_estimate=pl.CostEstimate(
            flops=flops, transcendentals=T * Np, bytes_accessed=bytes_accessed),
    )(negbt, approx, Lp, Qp, X)

    out = jnp.sum(out_parts, axis=0)           # tiny (T, N) partial combine
    if scalar_time:
        return out.reshape(N, 1)
    return out.reshape(T, N, 1)


# ----------------------------- setup glue (plain JAX) ------------------------

def compute_laplacian(adjacency):
    """Exact replica of NetworkDiffusionExpSource.compute_laplacian."""
    n = adjacency.shape[0]
    off_diag = adjacency - jnp.diagonal(adjacency) * jnp.eye(n, dtype=adjacency.dtype)
    degree = jnp.diag(jnp.sum(off_diag, axis=1))
    return degree - off_diag


class NetworkDiffusionExpSourceJAX:
    """Mirrors the PyTorch module's __init__/forward semantics."""

    def __init__(self, x_0, Covs, key):
        self.x_0 = jnp.asarray(x_0, jnp.float32)
        k_beta, k_a, k_xi = jax.random.split(key, 3)
        # Parameters (torch.randn) -> deterministic random values.
        self.beta = jax.random.normal(k_beta, (1,), dtype=jnp.float32)
        self.dimension = max(self.x_0.shape[0], self.x_0.shape[1])
        self.a = jax.random.normal(k_a, (self.dimension,), dtype=jnp.float32)
        self.xi = jax.random.normal(k_xi, (1,), dtype=jnp.float32)
        self.Covs = Covs
        lapl1 = compute_laplacian(jnp.asarray(Covs[0], jnp.float32))
        lapl2 = compute_laplacian(jnp.asarray(Covs[1], jnp.float32))
        # TODO(synk): torch.linalg.eigh has no Pallas equivalent; it runs once at
        # init in plain JAX (setup glue, not the forward hot path).
        L1, Q1 = jnp.linalg.eigh(lapl1)
        L2, Q2 = jnp.linalg.eigh(lapl2)
        self.lapl_eigs = ((L1, Q1), (L2, Q2))

    def forward(self, time, late, **kwargs):
        L, Q = self.lapl_eigs[1] if late else self.lapl_eigs[0]
        return network_diffusion_exp_source_forward(
            self.beta, self.xi, time, L, Q, self.x_0, self.a, **kwargs)

    def forward_reference(self, time, late):
        """Pure-JAX replica of the PyTorch forward, for validation."""
        L, Q = self.lapl_eigs[1] if late else self.lapl_eigs[0]
        Q_inv_x0 = Q.T @ self.x_0.reshape(-1, 1)
        weights = jnp.diag(jnp.exp(-self.beta * time * L))
        homogeneous = Q @ weights @ Q_inv_x0
        Q_inv_a = Q.T @ self.a.reshape(-1, 1)
        top = L[-1]
        approx = 1.0 / (self.beta * top + self.xi) * (
            jnp.exp(time * (self.beta * top + self.xi)) - 1.0) \
            - 1.0 / (self.beta * top) * (jnp.exp(self.beta * time * top) - 1.0)
        inhomogeneous = Q @ weights @ Q_inv_a * approx
        return homogeneous + inhomogeneous

    def return_eigens(self):
        return (self.lapl_eigs[0][0], self.lapl_eigs[1][0])

    @staticmethod
    def loss_function(x_pred, x):
        return jnp.sum((x_pred.squeeze() - x.squeeze()) ** 2)


# ----------------------------- demo ------------------------------------------

if __name__ == "__main__":
    N = 256  # graph size
    key = jax.random.PRNGKey(0)
    k_model, k_x0, k_c1, k_c2 = jax.random.split(key, 4)

    # x_0 is an (N, 1) column signal; dimension = max(N, 1) = N.
    x_0 = jax.random.normal(k_x0, (N, 1), dtype=jnp.float32)

    # Two symmetric non-negative adjacency/"covariance" matrices; scaled by 1/N
    # so the Laplacian spectrum (and hence the exponentials) stays moderate.
    a1 = jnp.abs(jax.random.normal(k_c1, (N, N), dtype=jnp.float32)) / N
    a2 = jnp.abs(jax.random.normal(k_c2, (N, N), dtype=jnp.float32)) / N
    Covs = (0.5 * (a1 + a1.T), 0.5 * (a2 + a2.T))

    model = NetworkDiffusionExpSourceJAX(x_0, Covs, k_model)

    def rel_err(x, y):
        return float(jnp.max(jnp.abs(x - y)) / (jnp.max(jnp.abs(y)) + 1e-6))

    time_val = 1.25
    ref_early = model.forward_reference(time_val, late=False)
    ref_late = model.forward_reference(time_val, late=True)

    # 1) Default path: bf16 Q/X stream, auto strip -> single part, single step.
    out_early = model.forward(time_val, late=False)
    out_late = model.forward(time_val, late=True)
    jax.block_until_ready(out_early)
    jax.block_until_ready(out_late)
    assert out_early.shape == (N, 1) and out_late.shape == (N, 1)
    e = rel_err(out_early, ref_early)
    assert e < 3e-2, f"early (bf16) mismatch: rel_err={e}"
    e = rel_err(out_late, ref_late)
    assert e < 3e-2, f"late (bf16) mismatch: rel_err={e}"

    # 2) f32-stream path (tight tolerance).
    out_f32 = model.forward(time_val, late=False, stream_dtype=jnp.float32)
    jax.block_until_ready(out_f32)
    e = rel_err(out_f32, ref_early)
    assert e < 1e-3, f"f32 mismatch: rel_err={e}"

    # 3) Multi-strip / two-part ("parallel" axis) path.
    out_mp = model.forward(time_val, late=False, col_tile=128)
    jax.block_until_ready(out_mp)
    e = rel_err(out_mp, ref_early)
    assert e < 3e-2, f"multi-part mismatch: rel_err={e}"

    # 4) Batched time points (T=3) amortizing the Q stream.
    times = jnp.array([0.5, 1.25, 2.0], dtype=jnp.float32)
    out_t = model.forward(times, late=True)
    jax.block_until_ready(out_t)
    assert out_t.shape == (3, N, 1)
    for i, t in enumerate([0.5, 1.25, 2.0]):
        e = rel_err(out_t[i], model.forward_reference(t, late=True))
        assert e < 3e-2, f"batched-time t={t} mismatch: rel_err={e}"

    print("KERNEL_OK")
</pallas_src>

<mosaic_0001>
module attributes {stable_mosaic.version = 11 : i64} {
  func.func @diffusion_kernel(%arg0: i32, %arg1: i32, %arg2: memref<1x1xf32, #tpu.memory_space<vmem>>, %arg3: memref<1x1xf32, #tpu.memory_space<vmem>>, %arg4: memref<1x256xf32, #tpu.memory_space<vmem>>, %arg5: memref<256x256xbf16, #tpu.memory_space<vmem>>, %arg6: memref<2x256xbf16, #tpu.memory_space<vmem>>, %arg7: memref<1x1x256xf32, #tpu.memory_space<vmem>>) attributes {dimension_semantics = [#tpu.dimension_semantics<parallel>, #tpu.dimension_semantics<arbitrary>], iteration_bounds = array<i64: 1, 1>, scalar_prefetch = 0 : i64, scratch_operands = 0 : i64, tpu.core_type = #tpu.core_type<tc>, window_params = [{pipeline_mode = #tpu.pipeline_mode<synchronous>, transform_indices = @transform_0, window_bounds = array<i64: 1, 1>}, {pipeline_mode = #tpu.pipeline_mode<synchronous>, transform_indices = @transform_1, window_bounds = array<i64: 1, 1>}, {transform_indices = @transform_2, window_bounds = array<i64: 1, 256>}, {transform_indices = @transform_3, window_bounds = array<i64: 256, 256>}, {pipeline_mode = #tpu.pipeline_mode<synchronous>, transform_indices = @transform_4, window_bounds = array<i64: 2, 256>}, {transform_indices = @transform_5, window_bounds = array<i64: 1, 1, 256>}]} {
    %c0_i32 = arith.constant 0 : i32
    %0 = arith.cmpi eq, %arg1, %c0_i32 : i32
    %1 = arith.extui %0 : i1 to i32
    %c0_i32_0 = arith.constant 0 : i32
    %2 = arith.cmpi ne, %1, %c0_i32_0 : i32
    scf.if %2 {
      %cst_19 = arith.constant 0.000000e+00 : f32
      %27 = vector.broadcast %cst_19 : f32 to vector<1x256xf32>
      %c0_20 = arith.constant 0 : index
      %c0_21 = arith.constant 0 : index
      %c0_22 = arith.constant 0 : index
      %28 = vector.load %arg7[%c0_20, %c0_21, %c0_22] : memref<1x1x256xf32, #tpu.memory_space<vmem>>, vector<1x1x256xf32>
      %29 = vector.shape_cast %28 : vector<1x1x256xf32> to vector<1x256xf32>
      %30 = vector.shape_cast %27 : vector<1x256xf32> to vector<1x1x256xf32>
      tpu.vector_store %arg7[%c0_20, %c0_21, %c0_22], %30 {strides = array<i32>} : memref<1x1x256xf32, #tpu.memory_space<vmem>>, vector<1x1x256xf32>,
    } else {
    }
    %c0 = arith.constant 0 : index
    %c0_1 = arith.constant 0 : index
    %3 = vector.load %arg2[%c0, %c0_1] : memref<1x1xf32, #tpu.memory_space<vmem>>, vector<1x1xf32>
    %c0_2 = arith.constant 0 : index
    %c0_3 = arith.constant 0 : index
    %4 = vector.load %arg4[%c0_2, %c0_3] : memref<1x256xf32, #tpu.memory_space<vmem>>, vector<1x256xf32>
    %5 = vector.broadcast %3 : vector<1x1xf32> to vector<1x256xf32>
    %6 = arith.mulf %5, %4 : vector<1x256xf32>
    %7 = math.exp %6 : vector<1x256xf32>
    %c0_4 = arith.constant 0 : index
    %c0_5 = arith.constant 0 : index
    %8 = vector.load %arg6[%c0_4, %c0_5] : memref<2x256xbf16, #tpu.memory_space<vmem>>, vector<2x256xbf16>
    %c0_6 = arith.constant 0 : index
    %c0_7 = arith.constant 0 : index
    %9 = vector.load %arg5[%c0_6, %c0_7] : memref<256x256xbf16, #tpu.memory_space<vmem>>, vector<256x256xbf16>
    %cst = arith.constant dense<0.000000e+00> : vector<2x256xf32>
    %10 = tpu.matmul %8, %9, %cst {dimension_numbers = #tpu.dot_dimension_numbers<[1], [0], [0], [1], [0, 0, 1, 1], [], []>} : vector<2x256xbf16>, vector<256x256xbf16>, vector<2x256xf32> -> vector<2x256xf32>
    %11 = vector.extract_strided_slice %10 {offsets = [0, 0], sizes = [1, 256], strides = [1, 1]} : vector<2x256xf32> to vector<1x256xf32>
    %c0_8 = arith.constant 0 : index
    %c0_9 = arith.constant 0 : index
    %12 = vector.load %arg3[%c0_8, %c0_9] : memref<1x1xf32, #tpu.memory_space<vmem>>, vector<1x1xf32>
    %13 = vector.extract_strided_slice %10 {offsets = [1, 0], sizes = [1, 256], strides = [1, 1]} : vector<2x256xf32> to vector<1x256xf32>
    %14 = vector.broadcast %12 : vector<1x1xf32> to vector<1x256xf32>
    %15 = arith.mulf %14, %13 : vector<1x256xf32>
    %16 = arith.addf %11, %15 : vector<1x256xf32>
    %17 = arith.mulf %7, %16 : vector<1x256xf32>
    %18 = arith.truncf %17 : vector<1x256xf32> to vector<1x256xbf16>
    %c0_10 = arith.constant 0 : index
    %c0_11 = arith.constant 0 : index
    %c0_12 = arith.constant 0 : index
    %19 = vector.load %arg7[%c0_10, %c0_11, %c0_12] : memref<1x1x256xf32, #tpu.memory_space<vmem>>, vector<1x1x256xf32>
    %20 = vector.shape_cast %19 : vector<1x1x256xf32> to vector<1x256xf32>
    %c0_13 = arith.constant 0 : index
    %c0_14 = arith.constant 0 : index
    %21 = vector.load %arg5[%c0_13, %c0_14] : memref<256x256xbf16, #tpu.memory_space<vmem>>, vector<256x256xbf16>
    %cst_15 = arith.constant dense<0.000000e+00> : vector<1x256xf32>
    %22 = tpu.matmul %18, %21, %cst_15 {dimension_numbers = #tpu.dot_dimension_numbers<[1], [1], [0], [0], [0, 0, 1, 0], [], []>} : vector<1x256xbf16>, vector<256x256xbf16>, vector<1x256xf32> -> vector<1x256xf32>
    %23 = arith.addf %20, %22 : vector<1x256xf32>
    %c0_16 = arith.constant 0 : index
    %c0_17 = arith.constant 0 : index
    %c0_18 = arith.constant 0 : index
    %24 = vector.load %arg7[%c0_16, %c0_17, %c0_18] : memref<1x1x256xf32, #tpu.memory_space<vmem>>, vector<1x1x256xf32>
    %25 = vector.shape_cast %24 : vector<1x1x256xf32> to vector<1x256xf32>
    %26 = vector.shape_cast %23 : vector<1x256xf32> to vector<1x1x256xf32>
    tpu.vector_store %arg7[%c0_16, %c0_17, %c0_18], %26 {strides = array<i32>} : memref<1x1x256xf32, #tpu.memory_space<vmem>>, vector<1x1x256xf32>,
    return
  }
  func.func @transform_0(%arg0: i32, %arg1: i32) -> (i32, i32) {
    %c0_i32 = arith.constant 0 : i32
    %c0_i32_0 = arith.constant 0 : i32
    %c0_i32_1 = arith.constant 0 : i32
    return %c0_i32, %c0_i32_0 : i32, i32
  }
  func.func @transform_1(%arg0: i32, %arg1: i32) -> (i32, i32) {
    %c0_i32 = arith.constant 0 : i32
    %c0_i32_0 = arith.constant 0 : i32
    %c0_i32_1 = arith.constant 0 : i32
    return %c0_i32, %c0_i32_0 : i32, i32
  }
  func.func @transform_2(%arg0: i32, %arg1: i32) -> (i32, i32) {
    %c1_i32 = arith.constant 1 : i32
    %0 = arith.muli %arg0, %c1_i32 : i32
    %1 = arith.addi %0, %arg1 : i32
    %c0_i32 = arith.constant 0 : i32
    %c0_i32_0 = arith.constant 0 : i32
    return %c0_i32, %1 : i32, i32
  }
  func.func @transform_3(%arg0: i32, %arg1: i32) -> (i32, i32) {
    %c1_i32 = arith.constant 1 : i32
    %0 = arith.muli %arg0, %c1_i32 : i32
    %1 = arith.addi %0, %arg1 : i32
    %c0_i32 = arith.constant 0 : i32
    %c0_i32_0 = arith.constant 0 : i32
    return %c0_i32, %1 : i32, i32
  }
  func.func @transform_4(%arg0: i32, %arg1: i32) -> (i32, i32) {
    %c0_i32 = arith.constant 0 : i32
    %c0_i32_0 = arith.constant 0 : i32
    %c0_i32_1 = arith.constant 0 : i32
    return %c0_i32, %c0_i32_0 : i32, i32
  }
  func.func @transform_5(%arg0: i32, %arg1: i32) -> (i32, i32, i32) {
    %c0_i32 = arith.constant 0 : i32
    %c0_i32_0 = arith.constant 0 : i32
    %c0_i32_1 = arith.constant 0 : i32
    return %arg0, %c0_i32, %c0_i32_0 : i32, i32, i32
  }
}

</mosaic_0001>

<llo_original>
// kernel: tpu_custom_call.1
$region0: #{tpu_custom_call.1}
  #allocation0 [shape = 'u32[]', space=smem, size = 0x4, offset = 0x4, fixed_abs, tag = 'smem constant byte address 0x4 - core index']
  #allocation1 [shape = 'u32[144,128]{1,0:T(1,128)}', space=vmem, size = 0x12000, scoped, tag = 'internal scratch']
  #allocation2 [shape = 'f32[1,1]{1,0:T(1,128)S(1)}', space=vmem, size = 0x200, scoped, tag = 'scoped memory for tpu_custom_call.1']
  #allocation3 [shape = 'f32[1,1]{1,0:T(1,128)S(1)}', space=vmem, size = 0x200, scoped, tag = 'scoped memory for tpu_custom_call.1']
  %s0 = inlined_call_operand.<no memory space> [shape: f32[1,1], index: 0, kind: input, shape index: {}]
  %s1 = inlined_call_operand.<no memory space> [shape: f32[1,1], index: 1, kind: input, shape index: {}]
  %s2 = inlined_call_operand.vmem [shape: f32[1,256], index: 2, kind: input, shape index: {}]
  %s3 = inlined_call_operand.hbm [shape: bf16[256,256], index: 3, kind: input, shape index: {}]
  %s4 = inlined_call_operand.vmem [shape: bf16[2,256], index: 4, kind: input, shape index: {}]
  %s5 = inlined_call_operand.hbm [shape: f32[1,1,256], index: 5, kind: output, shape index: {}]
  %s6 = sld [smem:[#allocation0]]
  $region38: #{tpu_custom_call.1} parent=0
    _
  %s8 = ssub.s32 1, %s6
  %s9 = scalar_select 0, %s8, %s6
  %v10 = vstv %s0
  %11 = vst [vmem:[#allocation2] sm:$0x1] %v10
  %v12 = vstv %s1
  %13 = vst [vmem:[#allocation3] sm:$0x1] %v12
  $region1: #{tpu_custom_call.1} parent=0
    #allocation4 [shape = 'u8[131072]{0}', space=vmem, size = 0x20000, scoped, tag = 'input window, operand 3, single buffered']
    #allocation5 [shape = 's32[1]{0}', space=sflag, size = 0x4, scoped, tag = 'scoped memory for tpu_custom_call.1']
    #allocation6 [shape = 's32[1]{0}', space=sflag, size = 0x4, scoped, tag = 'scoped memory for tpu_custom_call.1']
    #allocation7 [shape = 'u8[1024]{0}', space=vmem, size = 0x400, scoped, tag = 'output window, operand 0, single buffered']
    %14 = vsyncpa [#allocation5], 0
    %15 = vsyncpa [#allocation6], 0
    // Predicated region
    $region2: #{tpu_custom_call.1} parent=1 // pred_check
      _
    $region3: #{tpu_custom_call.1} parent=1 // pred_check_branch
      %17 = sbr.rel (0) target = $region5
    $region4: #{tpu_custom_call.1} parent=1 // pred_region
      _
    $region5: #{tpu_custom_call.1} parent=1 // pred_fallthru
      _
    // Predicated region
    $region6: #{tpu_custom_call.1} parent=1 // pred_check
      _
    $region7: #{tpu_custom_call.1} parent=1 // pred_check_branch
      %19 = sbr.rel (0) target = $region9
    $region8: #{tpu_custom_call.1} parent=1 // pred_region
      _
    $region9: #{tpu_custom_call.1} parent=1 // pred_fallthru
      _
    // Predicated region
    $region10: #{tpu_custom_call.1} parent=1 // pred_check
      _
    $region11: #{tpu_custom_call.1} parent=1 // pred_check_branch
      %21 = sbr.rel (0) target = $region13
    $region12: #{tpu_custom_call.1} parent=1 // pred_region
      %s22 = sadd.s32 0, 0
      %s23 = smul.u32 2, %s22
      %p24 = scmp.lt.s32.totalorder %s23, 1
      %s25 = scalar_select %p24, %s23, 1
      %s26 = scalar_lea.vmem %s2, %s25
      %s27 = sadd.s32 0, 0
      %s28 = smul.u32 2, %s27
    $region13: #{tpu_custom_call.1} parent=1 // pred_fallthru
      _
    // Predicated region
    $region14: #{tpu_custom_call.1} parent=1 // pred_check
      _
    $region15: #{tpu_custom_call.1} parent=1 // pred_check_branch
      %30 = sbr.rel (0) target = $region17
    $region16: #{tpu_custom_call.1} parent=1 // pred_region
      %s31 = sadd.s32 0, 0
      %s32 = smul.u32 2, %s31
      %s34 = ssub.s32 4096, 4096
      %35 = vsyncadd [#allocation5], %s34
      %s36 = smul.addr %s32, 64
      %s37 = scalar_lea.hbm %s3, %s36
      %s38 = sshll.u32 [#allocation4], 4
      %s39 = int_to_ptr.vmem [resolvable:$true] %s38
      %44 = dma.hbm_to_vmem [thread:$0]  %s37, 4096, %s39, [#allocation5], 128, 128, 8
    $region17: #{tpu_custom_call.1} parent=1 // pred_fallthru
      _
    // Predicated region
    $region18: #{tpu_custom_call.1} parent=1 // pred_check
      _
    $region19: #{tpu_custom_call.1} parent=1 // pred_check_branch
      %46 = sbr.rel (0) target = $region21
    $region20: #{tpu_custom_call.1} parent=1 // pred_region
      _
    $region21: #{tpu_custom_call.1} parent=1 // pred_fallthru
      _
    // Predicated region
    $region22: #{tpu_custom_call.1} parent=1 // pred_check
      _
    $region23: #{tpu_custom_call.1} parent=1 // pred_check_branch
      %48 = sbr.rel (0) target = $region25
    $region24: #{tpu_custom_call.1} parent=1 // pred_region
      %49 = dma.done [#allocation5], 4096
    $region25: #{tpu_custom_call.1} parent=1 // pred_fallthru
      _
    %s50 = sadd.s32 0, 0
    %s51 = smul.u32 2, %s50
    %p52 = scmp.lt.s32.totalorder %s51, 1
    %s53 = scalar_select %p52, %s51, 1
    %s54 = scalar_lea.vmem %s2, %s53
    %s55 = sadd.s32 0, 0
    %s56 = smul.u32 2, %s55
    %p57 = scmp.lt.s32.totalorder %s56, 1
    %s58 = scalar_select %p57, %s56, 1
    %s59 = scalar_lea.vmem %s2, %s58
    %s60 = sadd.s32 0, 0
    %s61 = smul.u32 2, %s60
    %s62 = sadd.s32 0, 0
    %s63 = smul.u32 2, %s62
    %p64 = scmp.eq.s32.totalorder 0, 0
    // Predicated region
    $region26: #{tpu_custom_call.1} parent=1 // pred_check
      %p65 = pneg %p64
    $region27: #{tpu_custom_call.1} parent=1 // pred_check_branch
      %67 = sbr.rel (%p65) target = $region29
    $region28: #{tpu_custom_call.1} parent=1 // pred_region
      %v68 = vlaneseq
      %vm69 = vcmp.ge.s32.totalorder %v68, 0
      %vm70 = vcmp.lt.s32.totalorder %v68, 256
      %vm71 = vmand %vm69, %vm70
      %72 = vst.msk [vmem:[#allocation7] sm:$0x3] %vm71, 0.0
    $region29: #{tpu_custom_call.1} parent=1 // pred_fallthru
      _
    %v73 = vld [vmem:[#allocation2] sm:$0x1]
    %v74 = vld [vmem:[%s59] sm:$0x3]
    %76 = vset.pattern.permute.xlu0 0
    %77 = vperm.xlu0 %76, %v73
    %v78 = vpop.permute.xlu0 %77
    %v80 = vlaneseq
    %v81 = vshrl.u32 %v80, 7
    %v82 = vsub.s32 0, %v81
    %v83 = vrot.slane %v78, %v82
    %v84 = vmul.f32 %v83, %v74
    %v85 = vmul.f32 %v84, 1.442695
    %v86 = vpow.pop %v85
    %v87 = vld [vmem:[%s4] sm:$0x3]
    %v88 = vld [vmem:[#allocation4] sm:$0xff]
    %v89 = vld [vmem:[#allocation4 + $0x8] sm:$0xff]
    %v90 = vld [vmem:[#allocation4 + $0x10] sm:$0xff]
    %v91 = vld [vmem:[#allocation4 + $0x18] sm:$0xff]
    %v92 = vld [vmem:[#allocation4 + $0x20] sm:$0xff]
    %v93 = vld [vmem:[#allocation4 + $0x28] sm:$0xff]
    %v94 = vld [vmem:[#allocation4 + $0x30] sm:$0xff]
    %v95 = vld [vmem:[#allocation4 + $0x38] sm:$0xff]
    %v96 = vld [vmem:[#allocation4 + $0x40] sm:$0xff]
    %v97 = vld [vmem:[#allocation4 + $0x48] sm:$0xff]
    %v98 = vld [vmem:[#allocation4 + $0x50] sm:$0xff]
    %v99 = vld [vmem:[#allocation4 + $0x58] sm:$0xff]
    %v100 = vld [vmem:[#allocation4 + $0x60] sm:$0xff]
    %v101 = vld [vmem:[#allocation4 + $0x68] sm:$0xff]
    %v102 = vld [vmem:[#allocation4 + $0x70] sm:$0xff]
    %v103 = vld [vmem:[#allocation4 + $0x78] sm:$0xff]
    %v104 = vld [vmem:[#allocation4 + $0x80] sm:$0xff]
    %v105 = vld [vmem:[#allocation4 + $0x88] sm:$0xff]
    %v106 = vld [vmem:[#allocation4 + $0x90] sm:$0xff]
    %v107 = vld [vmem:[#allocation4 + $0x98] sm:$0xff]
    %v108 = vld [vmem:[#allocation4 + $0xa0] sm:$0xff]
    %v109 = vld [vmem:[#allocation4 + $0xa8] sm:$0xff]
    %v110 = vld [vmem:[#allocation4 + $0xb0] sm:$0xff]
    %v111 = vld [vmem:[#allocation4 + $0xb8] sm:$0xff]
    %v112 = vld [vmem:[#allocation4 + $0xc0] sm:$0xff]
    %v113 = vld [vmem:[#allocation4 + $0xc8] sm:$0xff]
    %v114 = vld [vmem:[#allocation4 + $0xd0] sm:$0xff]
    %v115 = vld [vmem:[#allocation4 + $0xd8] sm:$0xff]
    %v116 = vld [vmem:[#allocation4 + $0xe0] sm:$0xff]
    %v117 = vld [vmem:[#allocation4 + $0xe8] sm:$0xff]
    %v118 = vld [vmem:[#allocation4 + $0xf0] sm:$0xff]
    %v119 = vld [vmem:[#allocation4 + $0xf8] sm:$0xff]
    %v122 = vunpack.c.l.s4 1966171168
    %v123 = vunpack.c.0.s8 %v122
    %v124 = vlaneseq
    %v125 = vshrl.u32 %v124, 7
    %v126 = vsub.s32 %v123, %v125
    %v127 = vrot.slane %v87, %v126
    %v128 = vcombine.high %v127, %v127
    %v130 = vunpack.c.l.s4 1966171168
    %v131 = vunpack.c.0.s8 %v130
    %v132 = vlaneseq
    %v133 = vshrl.u32 %v132, 7
    %v134 = vsub.s32 %v131, %v133
    %v135 = vrot.slane %v127, %v134
    %v137 = vunpack.c.l.s4 1966171168
    %v138 = vunpack.c.0.s8 %v137
    %v139 = vlaneseq
    %v140 = vshrl.u32 %v139, 7
    %v141 = vsub.s32 %v138, %v140
    %v142 = vrot.slane %v128, %v141
    %v177 = vunpack.c.l.b16 %v88
    %v178 = vunpack.c.h.b16 %v88
    %v179 = vunpack.c.l.b16 %v89
    %v180 = vunpack.c.h.b16 %v89
    %v181 = vunpack.c.l.b16 %v90
    %v182 = vunpack.c.h.b16 %v90
    %v183 = vunpack.c.l.b16 %v91
    %v184 = vunpack.c.h.b16 %v91
    %v185 = vunpack.c.l.b16 %v92
    %v186 = vunpack.c.h.b16 %v92
    %v187 = vunpack.c.l.b16 %v93
    %v188 = vunpack.c.h.b16 %v93
    %v189 = vunpack.c.l.b16 %v94
    %v190 = vunpack.c.h.b16 %v94
    %v191 = vunpack.c.l.b16 %v95
    %v192 = vunpack.c.h.b16 %v95
    %v193 = vunpack.c.l.b16 %v96
    %v194 = vunpack.c.h.b16 %v96
    %v195 = vunpack.c.l.b16 %v97
    %v196 = vunpack.c.h.b16 %v97
    %v197 = vunpack.c.l.b16 %v98
    %v198 = vunpack.c.h.b16 %v98
    %v199 = vunpack.c.l.b16 %v99
    %v200 = vunpack.c.h.b16 %v99
    %v201 = vunpack.c.l.b16 %v100
    %v202 = vunpack.c.h.b16 %v100
    %v203 = vunpack.c.l.b16 %v101
    %v204 = vunpack.c.h.b16 %v101
    %v205 = vunpack.c.l.b16 %v102
    %v206 = vunpack.c.h.b16 %v102
    %v207 = vunpack.c.l.b16 %v103
    %v208 = vunpack.c.h.b16 %v103
    %v209 = vunpack.c.l.b16 %v104
    %v210 = vunpack.c.h.b16 %v104
    %v211 = vunpack.c.l.b16 %v105
    %v212 = vunpack.c.h.b16 %v105
    %v213 = vunpack.c.l.b16 %v106
    %v214 = vunpack.c.h.b16 %v106
    %v215 = vunpack.c.l.b16 %v107
    %v216 = vunpack.c.h.b16 %v107
    %v217 = vunpack.c.l.b16 %v108
    %v218 = vunpack.c.h.b16 %v108
    %v219 = vunpack.c.l.b16 %v109
    %v220 = vunpack.c.h.b16 %v109
    %v221 = vunpack.c.l.b16 %v110
    %v222 = vunpack.c.h.b16 %v110
    %v223 = vunpack.c.l.b16 %v111
    %v224 = vunpack.c.h.b16 %v111
    %v225 = vunpack.c.l.b16 %v112
    %v226 = vunpack.c.h.b16 %v112
    %v227 = vunpack.c.l.b16 %v113
    %v228 = vunpack.c.h.b16 %v113
    %v229 = vunpack.c.l.b16 %v114
    %v230 = vunpack.c.h.b16 %v114
    %v231 = vunpack.c.l.b16 %v115
    %v232 = vunpack.c.h.b16 %v115
    %v233 = vunpack.c.l.b16 %v116
    %v234 = vunpack.c.h.b16 %v116
    %v235 = vunpack.c.l.b16 %v117
    %v236 = vunpack.c.h.b16 %v117
    %v237 = vunpack.c.l.b16 %v118
    %v238 = vunpack.c.h.b16 %v118
    %v239 = vunpack.c.l.b16 %v119
    %v240 = vunpack.c.h.b16 %v119
    %v241 = vpack.c.b16 %v179, %v177
    %v242 = vpack.c.b16 %v180, %v178
    %v243 = vpack.c.b16 %v183, %v181
    %v244 = vpack.c.b16 %v184, %v182
    %v245 = vpack.c.b16 %v187, %v185
    %v246 = vpack.c.b16 %v188, %v186
    %v247 = vpack.c.b16 %v191, %v189
    %v248 = vpack.c.b16 %v192, %v190
    %v249 = vpack.c.b16 %v195, %v193
    %v250 = vpack.c.b16 %v196, %v194
    %v251 = vpack.c.b16 %v199, %v197
    %v252 = vpack.c.b16 %v200, %v198
    %v253 = vpack.c.b16 %v203, %v201
    %v254 = vpack.c.b16 %v204, %v202
    %v255 = vpack.c.b16 %v207, %v205
    %v256 = vpack.c.b16 %v208, %v206
    %v257 = vpack.c.b16 %v211, %v209
    %v258 = vpack.c.b16 %v212, %v210
    %v259 = vpack.c.b16 %v215, %v213
    %v260 = vpack.c.b16 %v216, %v214
    %v261 = vpack.c.b16 %v219, %v217
    %v262 = vpack.c.b16 %v220, %v218
    %v263 = vpack.c.b16 %v223, %v221
    %v264 = vpack.c.b16 %v224, %v222
    %v265 = vpack.c.b16 %v227, %v225
    %v266 = vpack.c.b16 %v228, %v226
    %v267 = vpack.c.b16 %v231, %v229
    %v268 = vpack.c.b16 %v232, %v230
    %v269 = vpack.c.b16 %v235, %v233
    %v270 = vpack.c.b16 %v236, %v234
    %v271 = vpack.c.b16 %v239, %v237
    %v272 = vpack.c.b16 %v240, %v238
    %305 = vmatprep.subr.bf16.mxu0 %v256
    %306 = vmatpush1.bf16.msra.mxu0 %v255
    %307 = vmatprep.subr.bf16.mxu0 %v254
    %308 = vmatpush1.bf16.msra.mxu0 %v253
    %309 = vmatprep.subr.bf16.mxu0 %v252
    %310 = vmatpush1.bf16.msra.mxu0 %v251
    %311 = vmatprep.subr.bf16.mxu0 %v250
    %312 = vmatpush1.bf16.msra.mxu0 %v249
    %313 = vmatprep.subr.bf16.mxu0 %v248
    %314 = vmatpush1.bf16.msra.mxu0 %v247
    %315 = vmatprep.subr.bf16.mxu0 %v246
    %316 = vmatpush1.bf16.msra.mxu0 %v245
    %317 = vmatprep.subr.bf16.mxu0 %v244
    %318 = vmatpush1.bf16.msra.mxu0 %v243
    %319 = vmatprep.subr.bf16.mxu0 %v242
    %320 = vmatpush1.bf16.msra.mxu0 %v241
    %321 = vmatprep.subr.bf16.mxu0 %v272
    %322 = vmatpush2.bf16.msra.mxu0 %v271
    %323 = vmatprep.subr.bf16.mxu0 %v270
    %324 = vmatpush2.bf16.msra.mxu0 %v269
    %325 = vmatprep.subr.bf16.mxu0 %v268
    %326 = vmatpush2.bf16.msra.mxu0 %v267
    %327 = vmatprep.subr.bf16.mxu0 %v266
    %328 = vmatpush2.bf16.msra.mxu0 %v265
    %329 = vmatprep.subr.bf16.mxu0 %v264
    %330 = vmatpush2.bf16.msra.mxu0 %v263
    %331 = vmatprep.subr.bf16.mxu0 %v262
    %332 = vmatpush2.bf16.msra.mxu0 %v261
    %333 = vmatprep.subr.bf16.mxu0 %v260
    %334 = vmatpush2.bf16.msra.mxu0 %v259
    %335 = vmatprep.subr.bf16.mxu0 %v258
    %336 = vmatpush2.bf16.msra.mxu0 %v257
    %337 = vmatprep.mubr.bf16.mxu0 %v142
    %338 = vmatmul.mubr.bf16.gmra.mxu0 %v135
    %v339 = vpop.f32.mrf.mxu0
    %v340 = vadd.f32 0.0, %v339
    %v341 = vpop.f32.mrf.mxu0
    %v342 = vadd.f32 0.0, %v341
    %v343 = vpop.f32.mrf.mxu0
    %v344 = vpop.f32.mrf.mxu0
    %345 = vdwg.mxu0
    %v346 = vld [vmem:[#allocation3] sm:$0x1]
    %348 = vset.pattern.permute.xlu0 0
    %349 = vperm.xlu0 %348, %v346
    %v350 = vpop.permute.xlu0 %349
    %v352 = vlaneseq
    %v353 = vshrl.u32 %v352, 7
    %v354 = vsub.s32 0, %v353
    %v355 = vrot.slane %v350, %v354
    %v356 = vmul.f32 %v355, %v340
    %v357 = vmul.f32 %v355, %v342
    %v360 = vrot.slane %v356, 1
    %v361 = vrot.slane %v357, 1
    %v364 = vadd.f32 %v340, %v360
    %v365 = vadd.f32 %v342, %v361
    %v368 = vcombine.low %v364, %v365
    %v370 = vunpack.c.l.s4 1966171168
    %v371 = vunpack.c.0.s8 %v370
    %v372 = vlaneseq
    %v373 = vshrl.u32 %v372, 7
    %v374 = vsub.s32 %v371, %v373
    %v375 = vrot.slane %v368, %v374
    %v377 = vunpack.c.l.s4 1966171168
    %v378 = vunpack.c.0.s8 %v377
    %v379 = vlaneseq
    %v380 = vshrl.u32 %v379, 7
    %v381 = vsub.s32 %v378, %v380
    %v382 = vrot.slane %v375, %v381
    %v384 = vmul.f32 %v86, %v382
    %v386 = vlaneseq
    %v387 = vshrl.u32 %v386, 7
    %v388 = vsub.s32 0, %v387
    %v389 = vrot.slane %v384, %v388
    %v390 = vlaneseq
    %v391 = vshrl.u32 %v390, 7
    %v392 = vsub.s32 1, %v391
    %v393 = vrot.slane %v384, %v392
    %v396 = vpack.c.bf16 %v389, %v389
    %v397 = vpack.c.bf16 %v393, %v393
    %v398 = vld [vmem:[#allocation7] sm:$0x3]
    %399 = vmatprep.subr.bf16.mxu0 %v256
    %400 = vmatpush1.bf16.xpose.msra.mxu0 %v255
    %401 = vmatprep.subr.bf16.mxu0 %v254
    %402 = vmatpush1.bf16.xpose.msra.mxu0 %v253
    %403 = vmatprep.subr.bf16.mxu0 %v252
    %404 = vmatpush1.bf16.xpose.msra.mxu0 %v251
    %405 = vmatprep.subr.bf16.mxu0 %v250
    %406 = vmatpush1.bf16.xpose.msra.mxu0 %v249
    %407 = vmatprep.subr.bf16.mxu0 %v248
    %408 = vmatpush1.bf16.xpose.msra.mxu0 %v247
    %409 = vmatprep.subr.bf16.mxu0 %v246
    %410 = vmatpush1.bf16.xpose.msra.mxu0 %v245
    %411 = vmatprep.subr.bf16.mxu0 %v244
    %412 = vmatpush1.bf16.xpose.msra.mxu0 %v243
    %413 = vmatprep.subr.bf16.mxu0 %v242
    %414 = vmatpush1.bf16.xpose.msra.mxu0 %v241
    %415 = vmatprep.subr.bf16.mxu0 %v272
    %416 = vmatpush2.bf16.xpose.msra.mxu0 %v271
    %417 = vmatprep.subr.bf16.mxu0 %v270
    %418 = vmatpush2.bf16.xpose.msra.mxu0 %v269
    %419 = vmatprep.subr.bf16.mxu0 %v268
    %420 = vmatpush2.bf16.xpose.msra.mxu0 %v267
    %421 = vmatprep.subr.bf16.mxu0 %v266
    %422 = vmatpush2.bf16.xpose.msra.mxu0 %v265
    %423 = vmatprep.subr.bf16.mxu0 %v264
    %424 = vmatpush2.bf16.xpose.msra.mxu0 %v263
    %425 = vmatprep.subr.bf16.mxu0 %v262
    %426 = vmatpush2.bf16.xpose.msra.mxu0 %v261
    %427 = vmatprep.subr.bf16.mxu0 %v260
    %428 = vmatpush2.bf16.xpose.msra.mxu0 %v259
    %429 = vmatprep.subr.bf16.mxu0 %v258
    %430 = vmatpush2.bf16.xpose.msra.mxu0 %v257
    %431 = vmatprep.mubr.bf16.mxu0 %v397
    %432 = vmatmul.mubr.bf16.gmra.mxu0 %v396
    %v433 = vpop.f32.mrf.mxu0
    %v434 = vadd.f32 0.0, %v433
    %v435 = vpop.f32.mrf.mxu0
    %v436 = vadd.f32 0.0, %v435
    %v437 = vpop.f32.mrf.mxu0
    %v438 = vpop.f32.mrf.mxu0
    %439 = vdwg.mxu0
    %v442 = vcombine.low %v434, %v436
    %v444 = vunpack.c.l.s4 1966171168
    %v445 = vunpack.c.0.s8 %v444
    %v446 = vlaneseq
    %v447 = vshrl.u32 %v446, 7
    %v448 = vsub.s32 %v445, %v447
    %v449 = vrot.slane %v442, %v448
    %v451 = vunpack.c.l.s4 1966171168
    %v452 = vunpack.c.0.s8 %v451
    %v453 = vlaneseq
    %v454 = vshrl.u32 %v453, 7
    %v455 = vsub.s32 %v452, %v454
    %v456 = vrot.slane %v449, %v455
    %v458 = vadd.f32 %v398, %v456
    %v459 = vlaneseq
    %vm460 = vcmp.ge.s32.totalorder %v459, 0
    %vm461 = vcmp.lt.s32.totalorder %v459, 256
    %vm462 = vmand %vm460, %vm461
    %463 = vst.msk [vmem:[#allocation7] sm:$0x3] %vm462, %v458
    // Predicated region
    $region30: #{tpu_custom_call.1} parent=1 // pred_check
      _
    $region31: #{tpu_custom_call.1} parent=1 // pred_check_branch
      %465 = sbr.rel (0) target = $region33
    $region32: #{tpu_custom_call.1} parent=1 // pred_region
      %s467 = ssub.s32 32, 32
      %468 = vsyncadd [#allocation6], %s467
      %s470 = sshll.u32 [#allocation7], 4
      %s471 = int_to_ptr.vmem [resolvable:$true] %s470
      %473 = dma.vmem_to_hbm [thread:$0]  %s471, 32, %s5, [#allocation6]
    $region33: #{tpu_custom_call.1} parent=1 // pred_fallthru
      _
    // Predicated region
    $region34: #{tpu_custom_call.1} parent=1 // pred_check
      _
    $region35: #{tpu_custom_call.1} parent=1 // pred_check_branch
      %475 = sbr.rel (0) target = $region37
    $region36: #{tpu_custom_call.1} parent=1 // pred_region
      %476 = dma.done [#allocation6], 32
    $region37: #{tpu_custom_call.1} parent=1 // pred_fallthru
      _
    %477 = vsyncpa [#allocation5], 1
    %478 = vsyncpa [#allocation6], 1

</llo_original>
